<compile_context>
chip_gen: v7x
topology: tpu7x:2x2x1
jax: 0.10.0
libtpu: 0.0.40
codegen_flags: <defaults>
</compile_context>

<pallas_src>
import functools

import jax
import jax.numpy as jnp
import numpy as np
from jax import lax
from jax.experimental import pallas as pl
from jax.experimental.pallas import tpu as pltpu

ATT_NUM = 2          # attention_num
HIDDEN = 512         # nn.Linear(in_channels, 512)
NUM_CLASSES = 2      # nn.Linear(512 * attention_num, 2)
BN_EPS = 1e-5


def _vmem_limit_bytes():
    """Scoped-VMEM limit derived from the chip (v5e/v6e 128 MiB, v7x 64 MiB)."""
    try:
        cap = int(pltpu.get_tpu_info().vmem_capacity_bytes)
    except Exception:
        cap = 64 * 1024 * 1024          # conservative (v7x per-core)
    return max(32 * 1024 * 1024, min(int(cap * 0.75), 100 * 1024 * 1024))


def _pick_batch_tile(batch, c, hwp, budget):
    """Largest batch tile whose per-step VMEM footprint fits the budget.

    The fc output block (TB, A*HIDDEN) needs TB % 8 == 0 unless TB spans the
    whole batch; when more than one grid step is needed, prefer an even step
    count so a v7x dual-TensorCore 'parallel' axis stays balanced.
    """
    a = ATT_NUM

    def footprint(tb):
        x_blk = 2 * tb * c * hwp * 2                    # bf16 input, double-buffered
        att_blk = 2 * tb * max(a, 8) * hwp * 2          # bf16 att out, double-buffered
        fc_blk = 2 * tb * a * HIDDEN * 4                # f32 fc out, double-buffered
        h_tmp = 2 * a * c * hwp * 4                     # conv1/conv2 f32 intermediates
        pooled = tb * max(a, 8) * max(c, 128) * 4       # pooled scratch (padded)
        weights = 4 * (a * c * c + a * c * HIDDEN) * 2  # bf16 weights (buffered)
        return x_blk + att_blk + fc_blk + h_tmp + pooled + weights + (4 << 20)

    cands = [d for d in range(1, batch + 1)
             if batch % d == 0 and (d == batch or d % 8 == 0)]
    fitting = [d for d in cands if footprint(d) <= budget]
    if not fitting:
        fitting = [cands[0]]
    tb = max(fitting)
    steps = batch // tb
    if steps > 1 and steps % 2 == 1:
        for d in sorted(fitting, reverse=True):
            if (batch // d) % 2 == 0:
                return d
    return tb


def osme_mamc_kernel(x_ref, w1_ref, scale_ref, shift_ref, w2_ref, b2_ref,
                     wfc_ref, bfc_ref, fc_ref, att_ref, pooled_ref, *, hw_real):
    """One batch tile per grid step.

    x_ref:      (TB, C, HWp)   bf16
    w1_ref:     (A*C, C)       bf16   fused conv1 weights (both heads)
    scale_ref:  (A*C, 1)       f32    folded eval-BN scale
    shift_ref:  (A*C, 1)       f32    folded eval-BN shift (+ conv1 bias)
    w2_ref:     (A*C, 1)       f32    conv2 weight column
    b2_ref:     (A, 1)         f32    conv2 bias
    wfc_ref:    (A, C, 512)    bf16   per-head FC weights (transposed)
    bfc_ref:    (A, 1, 512)    f32    per-head FC bias
    fc_ref:     (TB, A*512)    f32    out
    att_ref:    (TB, A, HWp)   bf16   out (attention maps, lane-dense)
    pooled_ref: (TB, A, C)     f32    VMEM scratch
    """
    tb, c, _ = x_ref.shape
    n_heads = b2_ref.shape[0]
    inv_hw = 1.0 / float(hw_real)

    # grid-invariant operands, hoisted out of the per-sample loop
    w1 = w1_ref[...]            # (A*C, C)  bf16
    bn_scale = scale_ref[...]   # (A*C, 1)  f32
    bn_shift = shift_ref[...]   # (A*C, 1)  f32
    w2 = w2_ref[...]            # (A*C, 1)  f32
    b2 = b2_ref[...]            # (A, 1)    f32

    def body(b, carry):
        xb = x_ref[b]                                                # (C, HWp) bf16
        # both heads' 1x1 convs in one MXU matmul, f32 accumulation
        h = jnp.dot(w1, xb, preferred_element_type=jnp.float32)      # (A*C, HWp)
        # eval-mode BatchNorm (conv bias folded into shift) + ReLU
        h = jnp.maximum(h * bn_scale + bn_shift, 0.0)
        # second 1x1 conv (C -> 1 per head) on the VPU/XLU:
        # weight the channels, then per-head cross-sublane reduction
        hw2 = h * w2                                                 # (A*C, HWp)
        s_rows = [jnp.sum(hw2[i * c:(i + 1) * c, :], axis=0, keepdims=True)
                  for i in range(n_heads)]
        s = jnp.concatenate(s_rows, axis=0)                          # (A, HWp)
        att = jax.nn.sigmoid(s + b2)                                 # (A, HWp) f32
        att_ref[b] = att.astype(att_ref.dtype)                       # lane-dense store
        # attended global-average pool on the MXU; x stays un-transposed,
        # only the tiny (A, HWp) attention operand is transposed internally.
        # (padded HW columns of x are zero, so they do not perturb the sum)
        p_cb = lax.dot_general(
            xb, att.astype(jnp.bfloat16),
            dimension_numbers=(((1,), (1,)), ((), ())),
            preferred_element_type=jnp.float32)                      # (C, A)
        pooled_ref[b] = jnp.transpose(p_cb) * inv_hw                 # (A, C)
        return carry

    lax.fori_loop(0, tb, body, 0)

    # per-head fully connected over the whole batch tile (M = TB), bf16 MXU
    for a in range(n_heads):
        p_a = pooled_ref[:, a, :].astype(jnp.bfloat16)               # (TB, C)
        fc_a = jnp.dot(p_a, wfc_ref[a],
                       preferred_element_type=jnp.float32) + bfc_ref[a]
        fc_ref[:, a * HIDDEN:(a + 1) * HIDDEN] = fc_a                # lane-dense


def osme_mamc_forward(x_nchw, params, att_dtype=jnp.bfloat16):
    B, C, H, W = x_nchw.shape
    HW = H * W
    HWp = max(128, ((HW + 127) // 128) * 128)     # lane-dense / (8,128)-friendly
    A = ATT_NUM

    # ---- glue: layout & parameter packing (plain XLA) ----
    x = x_nchw.reshape(B, C, HW)
    if HWp != HW:
        x = jnp.pad(x, ((0, 0), (0, 0), (0, HWp - HW)))
    x = x.astype(jnp.bfloat16)

    w1 = params["conv1_w"].reshape(A * C, C).astype(jnp.bfloat16)
    b1 = params["conv1_b"].reshape(A, C)
    scale = params["bn_g"] / jnp.sqrt(params["bn_rv"] + BN_EPS)       # (A, C)
    shift = params["bn_b"] + (b1 - params["bn_rm"]) * scale
    scale_col = scale.reshape(A * C, 1).astype(jnp.float32)
    shift_col = shift.reshape(A * C, 1).astype(jnp.float32)
    w2col = params["conv2_w"].reshape(A * C, 1).astype(jnp.float32)
    b2 = params["conv2_b"].reshape(A, 1).astype(jnp.float32)
    wfc = jnp.transpose(params["fc_w"], (0, 2, 1)).astype(jnp.bfloat16)   # (A, C, 512)
    bfc = params["fc_b"].reshape(A, 1, HIDDEN).astype(jnp.float32)

    vmem_limit = _vmem_limit_bytes()
    TB = _pick_batch_tile(B, C, HWp, budget=vmem_limit // 2)
    nsteps = B // TB

    flops = B * (2 * (A * C) * C * HWp          # fused conv1
                 + 5 * (A * C) * HWp            # BN/ReLU + conv2 mul/reduce
                 + 2 * A * C * HWp              # attended pool
                 + 2 * A * C * HIDDEN)          # per-head fc
    bytes_accessed = (x.size * 2 + w1.size * 2 + wfc.size * 2
                      + 4 * (scale_col.size + shift_col.size + w2col.size
                             + b2.size + bfc.size)
                      + B * A * HWp * jnp.dtype(att_dtype).itemsize
                      + B * A * HIDDEN * 4)

    fc, att = pl.pallas_call(
        functools.partial(osme_mamc_kernel, hw_real=HW),
        out_shape=(
            jax.ShapeDtypeStruct((B, A * HIDDEN), jnp.float32),
            jax.ShapeDtypeStruct((B, A, HWp), att_dtype),
        ),
        grid_spec=pltpu.PrefetchScalarGridSpec(
            num_scalar_prefetch=0,
            grid=(nsteps,),
            in_specs=[
                pl.BlockSpec((TB, C, HWp), lambda b: (b, 0, 0)),        # x
                pl.BlockSpec((A * C, C), lambda b: (0, 0)),             # fused conv1 W
                pl.BlockSpec((A * C, 1), lambda b: (0, 0)),             # bn scale
                pl.BlockSpec((A * C, 1), lambda b: (0, 0)),             # bn shift (+b1)
                pl.BlockSpec((A * C, 1), lambda b: (0, 0)),             # conv2 W col
                pl.BlockSpec((A, 1), lambda b: (0, 0)),                 # conv2 bias
                pl.BlockSpec((A, C, HIDDEN), lambda b: (0, 0, 0)),      # fc W^T
                pl.BlockSpec((A, 1, HIDDEN), lambda b: (0, 0, 0)),      # fc bias
            ],
            out_specs=[
                pl.BlockSpec((TB, A * HIDDEN), lambda b: (b, 0)),       # fc out
                pl.BlockSpec((TB, A, HWp), lambda b: (b, 0, 0)),        # attention maps
            ],
            scratch_shapes=[pltpu.VMEM((TB, A, C), jnp.float32)],       # pooled
        ),
        compiler_params=pltpu.CompilerParams(
            dimension_semantics=("parallel",),
            vmem_limit_bytes=vmem_limit),
        cost_estimate=pl.CostEstimate(flops=flops,
                                      transcendentals=B * A * HWp,
                                      bytes_accessed=int(bytes_accessed)),
    )(x, w1, scale_col, shift_col, w2col, b2, wfc, bfc)

    # tiny 2-class classifier in plain XLA (avoids a 2-lane masked store)
    logits = fc @ params["cls_w"].T.astype(jnp.float32) + params["cls_b"]

    attention_outputs = [fc[:, i * HIDDEN:(i + 1) * HIDDEN] for i in range(A)]
    attention_maps = [att[:, i, :HW].reshape(B, 1, H, W) for i in range(A)]
    return logits, attention_outputs, attention_maps


def init_params(key, in_channels):
    """Deterministic synthetic parameters matching the PyTorch module shapes."""
    A, C = ATT_NUM, in_channels
    ks = jax.random.split(key, 12)

    def u(k, shape, fan_in):
        bound = 1.0 / np.sqrt(fan_in)
        return jax.random.uniform(k, shape, jnp.float32, -bound, bound)

    return dict(
        conv1_w=u(ks[0], (A, C, C, 1, 1), C),          # Conv2d(C, C, 1)
        conv1_b=u(ks[1], (A, C), C),
        bn_g=1.0 + 0.1 * jax.random.normal(ks[2], (A, C), jnp.float32),
        bn_b=0.1 * jax.random.normal(ks[3], (A, C), jnp.float32),
        bn_rm=0.1 * jax.random.normal(ks[4], (A, C), jnp.float32),
        bn_rv=1.0 + 0.1 * jax.random.uniform(ks[5], (A, C), jnp.float32),
        conv2_w=u(ks[6], (A, 1, C, 1, 1), C),          # Conv2d(C, 1, 1)
        conv2_b=u(ks[7], (A, 1), C),
        fc_w=u(ks[8], (A, HIDDEN, C), C),              # Linear(C, 512)
        fc_b=u(ks[9], (A, HIDDEN), C),
        cls_w=u(ks[10], (NUM_CLASSES, A * HIDDEN), A * HIDDEN),
        cls_b=u(ks[11], (NUM_CLASSES,), A * HIDDEN),
    )


def reference_forward(x_nchw, params):
    """Pure-JAX reference mirroring the PyTorch forward (eval-mode BN)."""
    B, C, H, W = x_nchw.shape
    x = jnp.transpose(x_nchw, (0, 2, 3, 1))            # (B, H, W, C)
    outputs, maps = [], []
    for i in range(ATT_NUM):
        w1 = params["conv1_w"][i].reshape(C, C)
        h = jnp.einsum("bhwc,dc->bhwd", x, w1) + params["conv1_b"][i]
        scale = params["bn_g"][i] / jnp.sqrt(params["bn_rv"][i] + BN_EPS)
        shift = params["bn_b"][i] - params["bn_rm"][i] * scale
        h = jnp.maximum(h * scale + shift, 0.0)
        w2 = params["conv2_w"][i].reshape(C)
        s = jnp.einsum("bhwc,c->bhw", h, w2) + params["conv2_b"][i, 0]
        att = jax.nn.sigmoid(s)[..., None]              # (B, H, W, 1)
        maps.append(jnp.transpose(att, (0, 3, 1, 2)))   # (B, 1, H, W)
        pooled = jnp.mean(x * att, axis=(1, 2))         # (B, C)
        outputs.append(pooled @ params["fc_w"][i].T + params["fc_b"][i])
    combined = jnp.concatenate(outputs, axis=1)
    out = combined @ params["cls_w"].T + params["cls_b"]
    return out, outputs, maps


if __name__ == "__main__":
    B, C, H, W = 2, 32, 16, 16
    key = jax.random.PRNGKey(0)
    kx, kp = jax.random.split(key)
    x = jax.random.normal(kx, (B, C, H, W), jnp.float32)
    params = init_params(kp, C)

    forward = jax.jit(osme_mamc_forward)
    out, fc_outs, att_maps = jax.block_until_ready(forward(x, params))

    ref_out, ref_fc, ref_maps = reference_forward(x, params)
    f32 = lambda t: np.asarray(jnp.asarray(t, jnp.float32))

    assert out.shape == (B, NUM_CLASSES)
    assert np.allclose(f32(out), f32(ref_out), atol=2e-2, rtol=2e-2)
    for a, b in zip(fc_outs, ref_fc):
        assert a.shape == (B, HIDDEN)
        assert np.allclose(f32(a), f32(b), atol=2e-2, rtol=2e-2)
    for a, b in zip(att_maps, ref_maps):
        assert a.shape == (B, 1, H, W)
        assert np.allclose(f32(a), f32(b), atol=2e-2, rtol=2e-2)

    print("KERNEL_OK")
</pallas_src>

<mosaic_0001>
module attributes {stable_mosaic.version = 11 : i64} {
  func.func @osme_mamc_kernel(%arg0: i32, %arg1: memref<2x32x256xbf16, #tpu.memory_space<vmem>>, %arg2: memref<64x32xbf16, #tpu.memory_space<vmem>>, %arg3: memref<64x1xf32, #tpu.memory_space<vmem>>, %arg4: memref<64x1xf32, #tpu.memory_space<vmem>>, %arg5: memref<64x1xf32, #tpu.memory_space<vmem>>, %arg6: memref<2x1xf32, #tpu.memory_space<vmem>>, %arg7: memref<2x32x512xbf16, #tpu.memory_space<vmem>>, %arg8: memref<2x1x512xf32, #tpu.memory_space<vmem>>, %arg9: memref<2x1024xf32, #tpu.memory_space<vmem>>, %arg10: memref<2x2x256xbf16, #tpu.memory_space<vmem>>, %arg11: memref<2x2x32xf32, #tpu.memory_space<vmem>>) attributes {dimension_semantics = [#tpu.dimension_semantics<parallel>], iteration_bounds = array<i64: 1>, scalar_prefetch = 0 : i64, scratch_operands = 1 : i64, tpu.core_type = #tpu.core_type<tc>, window_params = [{transform_indices = @transform_0, window_bounds = array<i64: 2, 32, 256>}, {pipeline_mode = #tpu.pipeline_mode<synchronous>, transform_indices = @transform_1, window_bounds = array<i64: 64, 32>}, {pipeline_mode = #tpu.pipeline_mode<synchronous>, transform_indices = @transform_2, window_bounds = array<i64: 64, 1>}, {pipeline_mode = #tpu.pipeline_mode<synchronous>, transform_indices = @transform_3, window_bounds = array<i64: 64, 1>}, {pipeline_mode = #tpu.pipeline_mode<synchronous>, transform_indices = @transform_4, window_bounds = array<i64: 64, 1>}, {pipeline_mode = #tpu.pipeline_mode<synchronous>, transform_indices = @transform_5, window_bounds = array<i64: 2, 1>}, {pipeline_mode = #tpu.pipeline_mode<synchronous>, transform_indices = @transform_6, window_bounds = array<i64: 2, 32, 512>}, {pipeline_mode = #tpu.pipeline_mode<synchronous>, transform_indices = @transform_7, window_bounds = array<i64: 2, 1, 512>}, {transform_indices = @transform_8, window_bounds = array<i64: 2, 1024>}, {transform_indices = @transform_9, window_bounds = array<i64: 2, 2, 256>}]} {
    %c0 = arith.constant 0 : index
    %c0_0 = arith.constant 0 : index
    %0 = vector.load %arg2[%c0, %c0_0] : memref<64x32xbf16, #tpu.memory_space<vmem>>, vector<64x32xbf16>
    %c0_1 = arith.constant 0 : index
    %c0_2 = arith.constant 0 : index
    %1 = vector.load %arg3[%c0_1, %c0_2] : memref<64x1xf32, #tpu.memory_space<vmem>>, vector<64x1xf32>
    %c0_3 = arith.constant 0 : index
    %c0_4 = arith.constant 0 : index
    %2 = vector.load %arg4[%c0_3, %c0_4] : memref<64x1xf32, #tpu.memory_space<vmem>>, vector<64x1xf32>
    %c0_5 = arith.constant 0 : index
    %c0_6 = arith.constant 0 : index
    %3 = vector.load %arg5[%c0_5, %c0_6] : memref<64x1xf32, #tpu.memory_space<vmem>>, vector<64x1xf32>
    %c0_7 = arith.constant 0 : index
    %c0_8 = arith.constant 0 : index
    %4 = vector.load %arg6[%c0_7, %c0_8] : memref<2x1xf32, #tpu.memory_space<vmem>>, vector<2x1xf32>
    %c0_i32 = arith.constant 0 : i32
    %c2_i32 = arith.constant 2 : i32
    %5 = arith.addi %c0_i32, %c2_i32 : i32
    %c1_i32 = arith.constant 1 : i32
    scf.for %arg12 = %c0_i32 to %5 step %c1_i32  : i32 {
      %28 = arith.index_cast %arg12 : i32 to index
      %c0_31 = arith.constant 0 : index
      %c0_32 = arith.constant 0 : index
      %29 = vector.load %arg1[%28, %c0_31, %c0_32] : memref<2x32x256xbf16, #tpu.memory_space<vmem>>, vector<1x32x256xbf16>
      %30 = vector.shape_cast %29 : vector<1x32x256xbf16> to vector<32x256xbf16>
      %cst_33 = arith.constant dense<0.000000e+00> : vector<64x256xf32>
      %31 = tpu.matmul %0, %30, %cst_33 {dimension_numbers = #tpu.dot_dimension_numbers<[1], [0], [0], [1], [0, 0, 1, 1], [], []>} : vector<64x32xbf16>, vector<32x256xbf16>, vector<64x256xf32> -> vector<64x256xf32>
      %32 = vector.broadcast %1 : vector<64x1xf32> to vector<64x256xf32>
      %33 = arith.mulf %31, %32 : vector<64x256xf32>
      %34 = vector.broadcast %2 : vector<64x1xf32> to vector<64x256xf32>
      %35 = arith.addf %33, %34 : vector<64x256xf32>
      %cst_34 = arith.constant 0.000000e+00 : f32
      %36 = vector.broadcast %cst_34 : f32 to vector<64x256xf32>
      %37 = arith.maximumf %35, %36 : vector<64x256xf32>
      %38 = vector.broadcast %3 : vector<64x1xf32> to vector<64x256xf32>
      %39 = arith.mulf %37, %38 : vector<64x256xf32>
      %40 = vector.extract_strided_slice %39 {offsets = [0, 0], sizes = [32, 256], strides = [1, 1]} : vector<64x256xf32> to vector<32x256xf32>
      %cst_35 = arith.constant dense<0.000000e+00> : vector<256xf32>
      %41 = vector.multi_reduction <add>, %40, %cst_35 [0] : vector<32x256xf32> to vector<256xf32>
      %42 = vector.shape_cast %41 : vector<256xf32> to vector<1x256xf32>
      %43 = vector.extract_strided_slice %39 {offsets = [32, 0], sizes = [32, 256], strides = [1, 1]} : vector<64x256xf32> to vector<32x256xf32>
      %cst_36 = arith.constant dense<0.000000e+00> : vector<256xf32>
      %44 = vector.multi_reduction <add>, %43, %cst_36 [0] : vector<32x256xf32> to vector<256xf32>
      %45 = vector.shape_cast %44 : vector<256xf32> to vector<1x256xf32>
      %46 = tpu.concatenate %42, %45 in 0 : vector<1x256xf32>, vector<1x256xf32> -> vector<2x256xf32>
      %47 = vector.broadcast %4 : vector<2x1xf32> to vector<2x256xf32>
      %48 = arith.addf %46, %47 : vector<2x256xf32>
      %49 = arith.negf %48 : vector<2x256xf32>
      %50 = math.exp %49 : vector<2x256xf32>
      %cst_37 = arith.constant 1.000000e+00 : f32
      %51 = vector.broadcast %cst_37 : f32 to vector<2x256xf32>
      %52 = arith.addf %51, %50 : vector<2x256xf32>
      %53 = arith.divf %51, %52 : vector<2x256xf32>
      %54 = arith.truncf %53 : vector<2x256xf32> to vector<2x256xbf16>
      %55 = arith.index_cast %arg12 : i32 to index
      %c0_38 = arith.constant 0 : index
      %c0_39 = arith.constant 0 : index
      %56 = vector.load %arg10[%55, %c0_38, %c0_39] : memref<2x2x256xbf16, #tpu.memory_space<vmem>>, vector<1x2x256xbf16>
      %57 = vector.shape_cast %56 : vector<1x2x256xbf16> to vector<2x256xbf16>
      %58 = vector.shape_cast %54 : vector<2x256xbf16> to vector<1x2x256xbf16>
      tpu.vector_store %arg10[%55, %c0_38, %c0_39], %58 {strides = array<i32>} : memref<2x2x256xbf16, #tpu.memory_space<vmem>>, vector<1x2x256xbf16>,
      %59 = arith.truncf %53 : vector<2x256xf32> to vector<2x256xbf16>
      %cst_40 = arith.constant dense<0.000000e+00> : vector<32x2xf32>
      %60 = tpu.matmul %30, %59, %cst_40 {dimension_numbers = #tpu.dot_dimension_numbers<[1], [1], [0], [0], [0, 0, 1, 0], [], []>} : vector<32x256xbf16>, vector<2x256xbf16>, vector<32x2xf32> -> vector<32x2xf32>
      %61 = tpu.transpose %60, [1, 0] : vector<32x2xf32> -> vector<2x32xf32>
      %cst_41 = arith.constant 3.906250e-03 : f32
      %62 = vector.broadcast %cst_41 : f32 to vector<2x32xf32>
      %63 = arith.mulf %61, %62 : vector<2x32xf32>
      %64 = arith.index_cast %arg12 : i32 to index
      %c0_42 = arith.constant 0 : index
      %c0_43 = arith.constant 0 : index
      %65 = vector.load %arg11[%64, %c0_42, %c0_43] : memref<2x2x32xf32, #tpu.memory_space<vmem>>, vector<1x2x32xf32>
      %66 = vector.shape_cast %65 : vector<1x2x32xf32> to vector<2x32xf32>
      %67 = vector.shape_cast %63 : vector<2x32xf32> to vector<1x2x32xf32>
      tpu.vector_store %arg11[%64, %c0_42, %c0_43], %67 {strides = array<i32>} : memref<2x2x32xf32, #tpu.memory_space<vmem>>, vector<1x2x32xf32>,
    }
    %c2_i32_9 = arith.constant 2 : i32
    %c0_10 = arith.constant 0 : index
    %c0_11 = arith.constant 0 : index
    %c0_12 = arith.constant 0 : index
    %6 = vector.load %arg11[%c0_10, %c0_11, %c0_12] : memref<2x2x32xf32, #tpu.memory_space<vmem>>, vector<2x1x32xf32>
    %7 = vector.shape_cast %6 : vector<2x1x32xf32> to vector<2x32xf32>
    %8 = arith.truncf %7 : vector<2x32xf32> to vector<2x32xbf16>
    %c0_13 = arith.constant 0 : index
    %c0_14 = arith.constant 0 : index
    %c0_15 = arith.constant 0 : index
    %9 = vector.load %arg7[%c0_13, %c0_14, %c0_15] : memref<2x32x512xbf16, #tpu.memory_space<vmem>>, vector<1x32x512xbf16>
    %10 = vector.shape_cast %9 : vector<1x32x512xbf16> to vector<32x512xbf16>
    %cst = arith.constant dense<0.000000e+00> : vector<2x512xf32>
    %11 = tpu.matmul %8, %10, %cst {dimension_numbers = #tpu.dot_dimension_numbers<[1], [0], [0], [1], [0, 0, 1, 1], [], []>} : vector<2x32xbf16>, vector<32x512xbf16>, vector<2x512xf32> -> vector<2x512xf32>
    %c0_16 = arith.constant 0 : index
    %c0_17 = arith.constant 0 : index
    %c0_18 = arith.constant 0 : index
    %12 = vector.load %arg8[%c0_16, %c0_17, %c0_18] : memref<2x1x512xf32, #tpu.memory_space<vmem>>, vector<1x1x512xf32>
    %13 = vector.shape_cast %12 : vector<1x1x512xf32> to vector<1x512xf32>
    %14 = vector.broadcast %13 : vector<1x512xf32> to vector<2x512xf32>
    %15 = arith.addf %11, %14 : vector<2x512xf32>
    %c0_19 = arith.constant 0 : index
    %c0_20 = arith.constant 0 : index
    %16 = vector.load %arg9[%c0_19, %c0_20] : memref<2x1024xf32, #tpu.memory_space<vmem>>, vector<2x512xf32>
    tpu.vector_store %arg9[%c0_19, %c0_20], %15 {strides = array<i32>} : memref<2x1024xf32, #tpu.memory_space<vmem>>, vector<2x512xf32>,
    %c0_21 = arith.constant 0 : index
    %c1 = arith.constant 1 : index
    %c0_22 = arith.constant 0 : index
    %17 = vector.load %arg11[%c0_21, %c1, %c0_22] : memref<2x2x32xf32, #tpu.memory_space<vmem>>, vector<2x1x32xf32>
    %18 = vector.shape_cast %17 : vector<2x1x32xf32> to vector<2x32xf32>
    %19 = arith.truncf %18 : vector<2x32xf32> to vector<2x32xbf16>
    %c1_23 = arith.constant 1 : index
    %c0_24 = arith.constant 0 : index
    %c0_25 = arith.constant 0 : index
    %20 = vector.load %arg7[%c1_23, %c0_24, %c0_25] : memref<2x32x512xbf16, #tpu.memory_space<vmem>>, vector<1x32x512xbf16>
    %21 = vector.shape_cast %20 : vector<1x32x512xbf16> to vector<32x512xbf16>
    %cst_26 = arith.constant dense<0.000000e+00> : vector<2x512xf32>
    %22 = tpu.matmul %19, %21, %cst_26 {dimension_numbers = #tpu.dot_dimension_numbers<[1], [0], [0], [1], [0, 0, 1, 1], [], []>} : vector<2x32xbf16>, vector<32x512xbf16>, vector<2x512xf32> -> vector<2x512xf32>
    %c1_27 = arith.constant 1 : index
    %c0_28 = arith.constant 0 : index
    %c0_29 = arith.constant 0 : index
    %23 = vector.load %arg8[%c1_27, %c0_28, %c0_29] : memref<2x1x512xf32, #tpu.memory_space<vmem>>, vector<1x1x512xf32>
    %24 = vector.shape_cast %23 : vector<1x1x512xf32> to vector<1x512xf32>
    %25 = vector.broadcast %24 : vector<1x512xf32> to vector<2x512xf32>
    %26 = arith.addf %22, %25 : vector<2x512xf32>
    %c0_30 = arith.constant 0 : index
    %c512 = arith.constant 512 : index
    %27 = vector.load %arg9[%c0_30, %c512] : memref<2x1024xf32, #tpu.memory_space<vmem>>, vector<2x512xf32>
    tpu.vector_store %arg9[%c0_30, %c512], %26 {strides = array<i32>} : memref<2x1024xf32, #tpu.memory_space<vmem>>, vector<2x512xf32>,
    return
  }
  func.func @transform_0(%arg0: i32) -> (i32, i32, i32) {
    %c0_i32 = arith.constant 0 : i32
    %c0_i32_0 = arith.constant 0 : i32
    %c0_i32_1 = arith.constant 0 : i32
    return %arg0, %c0_i32, %c0_i32_0 : i32, i32, i32
  }
  func.func @transform_1(%arg0: i32) -> (i32, i32) {
    %c0_i32 = arith.constant 0 : i32
    %c0_i32_0 = arith.constant 0 : i32
    %c0_i32_1 = arith.constant 0 : i32
    return %c0_i32, %c0_i32_0 : i32, i32
  }
  func.func @transform_2(%arg0: i32) -> (i32, i32) {
    %c0_i32 = arith.constant 0 : i32
    %c0_i32_0 = arith.constant 0 : i32
    %c0_i32_1 = arith.constant 0 : i32
    return %c0_i32, %c0_i32_0 : i32, i32
  }
  func.func @transform_3(%arg0: i32) -> (i32, i32) {
    %c0_i32 = arith.constant 0 : i32
    %c0_i32_0 = arith.constant 0 : i32
    %c0_i32_1 = arith.constant 0 : i32
    return %c0_i32, %c0_i32_0 : i32, i32
  }
  func.func @transform_4(%arg0: i32) -> (i32, i32) {
    %c0_i32 = arith.constant 0 : i32
    %c0_i32_0 = arith.constant 0 : i32
    %c0_i32_1 = arith.constant 0 : i32
    return %c0_i32, %c0_i32_0 : i32, i32
  }
  func.func @transform_5(%arg0: i32) -> (i32, i32) {
    %c0_i32 = arith.constant 0 : i32
    %c0_i32_0 = arith.constant 0 : i32
    %c0_i32_1 = arith.constant 0 : i32
    return %c0_i32, %c0_i32_0 : i32, i32
  }
  func.func @transform_6(%arg0: i32) -> (i32, i32, i32) {
    %c0_i32 = arith.constant 0 : i32
    %c0_i32_0 = arith.constant 0 : i32
    %c0_i32_1 = arith.constant 0 : i32
    %c0_i32_2 = arith.constant 0 : i32
    return %c0_i32, %c0_i32_0, %c0_i32_1 : i32, i32, i32
  }
  func.func @transform_7(%arg0: i32) -> (i32, i32, i32) {
    %c0_i32 = arith.constant 0 : i32
    %c0_i32_0 = arith.constant 0 : i32
    %c0_i32_1 = arith.constant 0 : i32
    %c0_i32_2 = arith.constant 0 : i32
    return %c0_i32, %c0_i32_0, %c0_i32_1 : i32, i32, i32
  }
  func.func @transform_8(%arg0: i32) -> (i32, i32) {
    %c0_i32 = arith.constant 0 : i32
    %c0_i32_0 = arith.constant 0 : i32
    return %arg0, %c0_i32 : i32, i32
  }
  func.func @transform_9(%arg0: i32) -> (i32, i32, i32) {
    %c0_i32 = arith.constant 0 : i32
    %c0_i32_0 = arith.constant 0 : i32
    %c0_i32_1 = arith.constant 0 : i32
    return %arg0, %c0_i32, %c0_i32_0 : i32, i32, i32
  }
}

</mosaic_0001>

<llo_original>
// kernel: squeeze.2
$region0: #{squeeze.2}
  %s0 = inlined_call_operand.vmem [shape: bf16[2,256], index: 0, kind: input, shape index: {}]
  %s1 = inlined_call_operand.hbm [shape: bf16[2,1,16,16], index: 1, kind: output, shape index: {}]
  $region1: #{squeeze.2} parent=0
    #allocation0 [shape = 'u8[8192]{0}', space=vmem, size = 0x2000, scoped, tag = 'operand span for operand 1']
    #allocation1 [shape = 's32[1]{0}', space=sflag, size = 0x4, scoped, tag = 'scoped memory for squeeze.2']
    #allocation2 [shape = 'u8[16384]{0}', space=vmem, size = 0x4000, scoped, tag = 'scoped mem for output reshape']
    #allocation3 [shape = 'u8[8192]{0}', space=vmem, size = 0x2000, scoped, tag = 'scoped mem for input reshape']
    %2 = vsyncpa [#allocation1], 0
    %s4 = smul.u32 1, 2
    %s5 = sshllo.u32 0, %s4
    %s6 = scalar_lea.vmem %s0, 1
    %s7 = sshrl.u32 %s5, 1
    %s8 = sor.u32 %s5, %s7
    %s9 = sand.u32 %s8, 85
    %s10 = sshrl.u32 %s9, 1
    %s11 = sor.u32 %s9, %s10
    %s12 = sand.u32 51, %s11
    %s13 = sshrl.u32 %s12, 2
    %s14 = sor.u32 %s12, %s13
    %s15 = sand.u32 15, %s14
    %v16 = vld [vmem:[%s6] sm:%s15]
    %v17 = vunpack.c.l.bf16 %v16
    %v18 = vunpack.c.h.bf16 %v16
    %s19 = scalar_lea.vmem [#allocation3], 8
    %20 = vst [vmem:[%s19] sm:%s5] %v17
    %s21 = sshrl.u32 %s5, 1
    %s22 = sor.u32 %s5, %s21
    %s23 = sand.u32 %s22, 85
    %s24 = sshrl.u32 %s23, 1
    %s25 = sor.u32 %s23, %s24
    %s26 = sand.u32 51, %s25
    %s27 = sshrl.u32 %s26, 2
    %s28 = sor.u32 %s26, %s27
    %s29 = sand.u32 15, %s28
    %v30 = vld [vmem:[%s0] sm:%s29]
    %v31 = vunpack.c.l.bf16 %v30
    %v32 = vunpack.c.h.bf16 %v30
    %33 = vst [vmem:[#allocation3] sm:%s5] %v31
    %v34 = vld [vmem:[#allocation3] sm:$0x3]
    %vm35 = vcmask 130048
    %36 = vst.msk [vmem:[#allocation2] ss:$16 sm:$0x3] %vm35, %v34
    %s37 = scalar_lea.vmem [#allocation3], 8
    %v38 = vld [vmem:[%s37] sm:$0x3]
    %vm39 = vcmask 130048
    %s40 = scalar_lea.vmem [#allocation2], 8
    %41 = vst.msk [vmem:[%s40] ss:$16 sm:$0x3] %vm39, %v38
    %v42 = vld.sshfl [vmem:[#allocation3] sm:$0xff pattern:$0x99999180]
    %43 = vrot.lane.b32.xlu0 %v42, 112
    %v44 = vpop.permute.xlu0 %43
    %vm45 = vcmask 130048
    %s46 = scalar_lea.vmem [#allocation2], 1
    %47 = vst.msk [vmem:[%s46] ss:$8 sm:$0xf] %vm45, %v44
    %v48 = vld.sshfl [vmem:[#allocation3] sm:$0xff pattern:$0x99999180]
    %49 = vrot.lane.b32.xlu0 %v48, 96
    %v50 = vpop.permute.xlu0 %49
    %vm51 = vcmask 130048
    %s52 = scalar_lea.vmem [#allocation2], 2
    %53 = vst.msk [vmem:[%s52] ss:$8 sm:$0xf] %vm51, %v50
    %v54 = vld.sshfl [vmem:[#allocation3] sm:$0xff pattern:$0x99999180]
    %55 = vrot.lane.b32.xlu0 %v54, 80
    %v56 = vpop.permute.xlu0 %55
    %vm57 = vcmask 130048
    %s58 = scalar_lea.vmem [#allocation2], 3
    %59 = vst.msk [vmem:[%s58] ss:$8 sm:$0xf] %vm57, %v56
    %v60 = vld.sshfl [vmem:[#allocation3] sm:$0xff pattern:$0x99999180]
    %61 = vrot.lane.b32.xlu0 %v60, 64
    %v62 = vpop.permute.xlu0 %61
    %vm63 = vcmask 130048
    %s64 = scalar_lea.vmem [#allocation2], 4
    %65 = vst.msk [vmem:[%s64] ss:$8 sm:$0xf] %vm63, %v62
    %v66 = vld.sshfl [vmem:[#allocation3] sm:$0xff pattern:$0x99999180]
    %67 = vrot.lane.b32.xlu0 %v66, 48
    %v68 = vpop.permute.xlu0 %67
    %vm69 = vcmask 130048
    %s70 = scalar_lea.vmem [#allocation2], 5
    %71 = vst.msk [vmem:[%s70] ss:$8 sm:$0xf] %vm69, %v68
    %v72 = vld.sshfl [vmem:[#allocation3] sm:$0xff pattern:$0x99999180]
    %73 = vrot.lane.b32.xlu0 %v72, 32
    %v74 = vpop.permute.xlu0 %73
    %vm75 = vcmask 130048
    %s76 = scalar_lea.vmem [#allocation2], 6
    %77 = vst.msk [vmem:[%s76] ss:$8 sm:$0xf] %vm75, %v74
    %v78 = vld.sshfl [vmem:[#allocation3] sm:$0xff pattern:$0x99999180]
    %79 = vrot.lane.b32.xlu0 %v78, 16
    %v80 = vpop.permute.xlu0 %79
    %vm81 = vcmask 130048
    %s82 = scalar_lea.vmem [#allocation2], 7
    %83 = vst.msk [vmem:[%s82] ss:$8 sm:$0xf] %vm81, %v80
    %s85 = smul.u32 4, 2
    %s86 = sshllo.u32 0, %s85
    %s87 = sshrl.u32 %s85, 1
    %v88 = vld [vmem:[#allocation2] sm:%s86]
    %v89 = vpack.c.bf16 0.0, %v88
    %s90 = sshllo.u32 0, %s87
    %91 = vst [vmem:[#allocation0] sm:%s90] %v89
    %s92 = scalar_lea.vmem [#allocation2], 8
    %v93 = vld [vmem:[%s92] sm:%s86]
    %v94 = vpack.c.bf16 0.0, %v93
    %s95 = sshllo.u32 0, %s87
    %s96 = scalar_lea.vmem [#allocation0], 4
    %97 = vst [vmem:[%s96] sm:%s95] %v94
    %s98 = scalar_lea.vmem [#allocation2], 16
    %v99 = vld [vmem:[%s98] sm:%s86]
    %v100 = vpack.c.bf16 0.0, %v99
    %s101 = sshllo.u32 0, %s87
    %s102 = smul.addr 4, 2
    %s103 = scalar_lea.vmem [#allocation0], %s102
    %104 = vst [vmem:[%s103] sm:%s101] %v100
    %s105 = scalar_lea.vmem [#allocation2], 24
    %v106 = vld [vmem:[%s105] sm:%s86]
    %v107 = vpack.c.bf16 0.0, %v106
    %s108 = sshllo.u32 0, %s87
    %s109 = smul.addr 4, 3
    %s110 = scalar_lea.vmem [#allocation0], %s109
    %111 = vst [vmem:[%s110] sm:%s108] %v107
    %s113 = ssub.s32 256, 256
    %114 = vsyncadd [#allocation1], %s113
    %s116 = sshll.u32 [#allocation0], 4
    %s117 = int_to_ptr.vmem [resolvable:$true] %s116
    %119 = dma.vmem_to_hbm [thread:$0]  %s117, 256, %s1, [#allocation1]
    %120 = dma.done [#allocation1], 256
    %121 = vsyncpa [#allocation1], 1

// kernel: osme_mamc_forward.1
$region0: #{osme_mamc_forward.1}
  #allocation0 [shape = 'u32[]', space=smem, size = 0x4, offset = 0x4, fixed_abs, tag = 'smem constant byte address 0x4 - core index']
  #allocation1 [shape = 'u32[144,128]{1,0:T(1,128)}', space=vmem, size = 0x12000, scoped, tag = 'internal scratch']
  #allocation2 [shape = 'f32[2,2,32]{2,1,0:T(2,128)}', space=vmem, size = 0x800, scoped, tag = 'scratch operand']
  %s0 = inlined_call_operand.vmem [shape: bf16[2,32,256], index: 0, kind: input, shape index: {}]
  %s1 = inlined_call_operand.vmem [shape: bf16[64,32], index: 1, kind: input, shape index: {}]
  %s2 = inlined_call_operand.vmem [shape: f32[64,1], index: 2, kind: input, shape index: {}]
  %s3 = inlined_call_operand.vmem [shape: f32[64,1], index: 3, kind: input, shape index: {}]
  %s4 = inlined_call_operand.vmem [shape: f32[64,1], index: 4, kind: input, shape index: {}]
  %s5 = inlined_call_operand.vmem [shape: f32[2,1], index: 5, kind: input, shape index: {}]
  %s6 = inlined_call_operand.vmem [shape: bf16[2,32,512], index: 6, kind: input, shape index: {}]
  %s7 = inlined_call_operand.vmem [shape: f32[2,1,512], index: 7, kind: input, shape index: {}]
  %s8 = inlined_call_operand.vmem [shape: f32[2,1024], index: 8, kind: output, shape index: {0}]
  %s9 = inlined_call_operand.vmem [shape: bf16[2,2,256], index: 9, kind: output, shape index: {1}]
  %10 = xla_tuple %s8, %s9
  %s11 = sld [smem:[#allocation0]]
  $region57: #{osme_mamc_forward.1} parent=0
    _
  %s13 = ssub.s32 1, %s11
  %s14 = scalar_select 0, %s13, %s11
  // Predicated region
  $region2: #{osme_mamc_forward.1} parent=0 // pred_check
    _
  $region3: #{osme_mamc_forward.1} parent=0 // pred_check_branch
    %16 = sbr.rel (0) target = $region5
  $region4: #{osme_mamc_forward.1} parent=0 // pred_region
    _
  $region5: #{osme_mamc_forward.1} parent=0 // pred_fallthru
    _
  // Predicated region
  $region6: #{osme_mamc_forward.1} parent=0 // pred_check
    _
  $region7: #{osme_mamc_forward.1} parent=0 // pred_check_branch
    %18 = sbr.rel (0) target = $region9
  $region8: #{osme_mamc_forward.1} parent=0 // pred_region
    _
  $region9: #{osme_mamc_forward.1} parent=0 // pred_fallthru
    _
  // Predicated region
  $region10: #{osme_mamc_forward.1} parent=0 // pred_check
    _
  $region11: #{osme_mamc_forward.1} parent=0 // pred_check_branch
    %20 = sbr.rel (0) target = $region13
  $region12: #{osme_mamc_forward.1} parent=0 // pred_region
    _
  $region13: #{osme_mamc_forward.1} parent=0 // pred_fallthru
    _
  // Predicated region
  $region14: #{osme_mamc_forward.1} parent=0 // pred_check
    _
  $region15: #{osme_mamc_forward.1} parent=0 // pred_check_branch
    %22 = sbr.rel (0) target = $region17
  $region16: #{osme_mamc_forward.1} parent=0 // pred_region
    _
  $region17: #{osme_mamc_forward.1} parent=0 // pred_fallthru
    _
  // Predicated region
  $region18: #{osme_mamc_forward.1} parent=0 // pred_check
    _
  $region19: #{osme_mamc_forward.1} parent=0 // pred_check_branch
    %24 = sbr.rel (0) target = $region21
  $region20: #{osme_mamc_forward.1} parent=0 // pred_region
    _
  $region21: #{osme_mamc_forward.1} parent=0 // pred_fallthru
    _
  // Predicated region
  $region22: #{osme_mamc_forward.1} parent=0 // pred_check
    _
  $region23: #{osme_mamc_forward.1} parent=0 // pred_check_branch
    %26 = sbr.rel (0) target = $region25
  $region24: #{osme_mamc_forward.1} parent=0 // pred_region
    _
  $region25: #{osme_mamc_forward.1} parent=0 // pred_fallthru
    _
  // Predicated region
  $region26: #{osme_mamc_forward.1} parent=0 // pred_check
    _
  $region27: #{osme_mamc_forward.1} parent=0 // pred_check_branch
    %28 = sbr.rel (0) target = $region29
  $region28: #{osme_mamc_forward.1} parent=0 // pred_region
    _
  $region29: #{osme_mamc_forward.1} parent=0 // pred_fallthru
    _
  // Predicated region
  $region30: #{osme_mamc_forward.1} parent=0 // pred_check
    _
  $region31: #{osme_mamc_forward.1} parent=0 // pred_check_branch
    %30 = sbr.rel (0) target = $region33
  $region32: #{osme_mamc_forward.1} parent=0 // pred_region
    _
  $region33: #{osme_mamc_forward.1} parent=0 // pred_fallthru
    _
  %v32 = vld [vmem:[%s1] sm:$0xf]
  %v33 = vld [vmem:[%s1 + $0x4] sm:$0xf]
  %v34 = vld [vmem:[%s1 + $0x8] sm:$0xf]
  %v35 = vld [vmem:[%s1 + $0xc] sm:$0xf]
  %v36 = vld [vmem:[%s1 + $0x10] sm:$0xf]
  %v37 = vld [vmem:[%s1 + $0x14] sm:$0xf]
  %v38 = vld [vmem:[%s1 + $0x18] sm:$0xf]
  %v39 = vld [vmem:[%s1 + $0x1c] sm:$0xf]
  %v40 = vld [vmem:[%s2] sm:$0xff]
  %v41 = vld [vmem:[%s2 + $0x8] sm:$0xff]
  %v42 = vld [vmem:[%s2 + $0x10] sm:$0xff]
  %v43 = vld [vmem:[%s2 + $0x18] sm:$0xff]
  %v44 = vld [vmem:[%s2 + $0x20] sm:$0xff]
  %v45 = vld [vmem:[%s2 + $0x28] sm:$0xff]
  %v46 = vld [vmem:[%s2 + $0x30] sm:$0xff]
  %v47 = vld [vmem:[%s2 + $0x38] sm:$0xff]
  %v48 = vld [vmem:[%s3] sm:$0xff]
  %v49 = vld [vmem:[%s3 + $0x8] sm:$0xff]
  %v50 = vld [vmem:[%s3 + $0x10] sm:$0xff]
  %v51 = vld [vmem:[%s3 + $0x18] sm:$0xff]
  %v52 = vld [vmem:[%s3 + $0x20] sm:$0xff]
  %v53 = vld [vmem:[%s3 + $0x28] sm:$0xff]
  %v54 = vld [vmem:[%s3 + $0x30] sm:$0xff]
  %v55 = vld [vmem:[%s3 + $0x38] sm:$0xff]
  %v56 = vld [vmem:[%s4] sm:$0xff]
  %v57 = vld [vmem:[%s4 + $0x8] sm:$0xff]
  %v58 = vld [vmem:[%s4 + $0x10] sm:$0xff]
  %v59 = vld [vmem:[%s4 + $0x18] sm:$0xff]
  %v60 = vld [vmem:[%s4 + $0x20] sm:$0xff]
  %v61 = vld [vmem:[%s4 + $0x28] sm:$0xff]
  %v62 = vld [vmem:[%s4 + $0x30] sm:$0xff]
  %v63 = vld [vmem:[%s4 + $0x38] sm:$0xff]
  %v64 = vld [vmem:[%s5] sm:$0x3]
  loop: start=0, step=1, limit=2
  $region34: #{osme_mamc_forward.1} parent=0 // loop_pre_header
    _
  $region35: #{osme_mamc_forward.1} parent=0 // loop_header
    %s66 = sphi 0, %s70
    %p67 = scmp.ge.s32.totalorder %s66, 2
  $region36: #{osme_mamc_forward.1} parent=0 // loop_header_branch
    %69 = sbr.rel (%p67) target = $region40
  $region37: #{osme_mamc_forward.1} parent=0 // loop_body
    %s71 = smul.u32 %s66, 8
    %s72 = smul.addr %s71, 4
    %s73 = scalar_lea.vmem %s0, %s72
    %v74 = vld [vmem:[%s73] sm:$0xff]
    %v75 = vld [vmem:[%s73 + $0x8] sm:$0xff]
    %v76 = vld [vmem:[%s73 + $0x10] sm:$0xff]
    %v77 = vld [vmem:[%s73 + $0x18] sm:$0xff]
    %v86 = vunpack.c.l.b16 %v32
    %v87 = vunpack.c.l.b16 %v33
    %v88 = vunpack.c.l.b16 %v34
    %v89 = vunpack.c.l.b16 %v35
    %v90 = vunpack.c.l.b16 %v36
    %v91 = vunpack.c.l.b16 %v37
    %v92 = vunpack.c.l.b16 %v38
    %v93 = vunpack.c.l.b16 %v39
    %v94 = vpack.c.b16 %v87, %v86
    %v95 = vpack.c.b16 %v89, %v88
    %v96 = vpack.c.b16 %v91, %v90
    %v97 = vpack.c.b16 %v93, %v92
    %v102 = vunpack.c.l.b16 %v74
    %v103 = vunpack.c.h.b16 %v74
    %v104 = vunpack.c.l.b16 %v75
    %v105 = vunpack.c.h.b16 %v75
    %v106 = vunpack.c.l.b16 %v76
    %v107 = vunpack.c.h.b16 %v76
    %v108 = vunpack.c.l.b16 %v77
    %v109 = vunpack.c.h.b16 %v77
    %v110 = vpack.c.b16 %v104, %v102
    %v111 = vpack.c.b16 %v105, %v103
    %v112 = vpack.c.b16 %v108, %v106
    %v113 = vpack.c.b16 %v109, %v107
    %vm118 = vcmask 261120
    %v120 = vsel %vm118, %v94, 0
    %v123 = vsel %vm118, %v95, 0
    %v126 = vsel %vm118, %v96, 0
    %v129 = vsel %vm118, %v97, 0
    %131 = vmatprep.subr.bf16.mxu0 %v111
    %132 = vmatpush1.bf16.msra.mxu0 %v110
    %133 = vmatprep.subr.bf16.mxu0 %v113
    %134 = vmatpush1.bf16.msra.mxu0 %v112
    %135 = vmatprep.subr.bf16.mxu0 0
    %136 = vmatpush1.bf16.msra.mxu0 0
    %137 = vmatprep.subr.bf16.mxu0 0
    %138 = vmatpush1.bf16.msra.mxu0 0
    %139 = vmatprep.subr.bf16.mxu0 0
    %140 = vmatpush1.bf16.msra.mxu0 0
    %141 = vmatprep.subr.bf16.mxu0 0
    %142 = vmatpush1.bf16.msra.mxu0 0
    %143 = vmatprep.subr.bf16.mxu0 0
    %144 = vmatpush1.bf16.msra.mxu0 0
    %145 = vmatprep.subr.bf16.mxu0 0
    %146 = vmatpush1.bf16.msra.mxu0 0
    %147 = vmatprep.subr.bf16.mxu0 0
    %148 = vmatpush1.bf16.msra.mxu0 0
    %149 = vmatprep.subr.bf16.mxu0 0
    %150 = vmatpush1.bf16.msra.mxu0 0
    %151 = vmatprep.subr.bf16.mxu0 0
    %152 = vmatpush1.bf16.msra.mxu0 0
    %153 = vmatprep.subr.bf16.mxu0 0
    %154 = vmatpush1.bf16.msra.mxu0 0
    %155 = vmatprep.subr.bf16.mxu0 0
    %156 = vmatpush1.bf16.msra.mxu0 0
    %157 = vmatprep.subr.bf16.mxu0 0
    %158 = vmatpush1.bf16.msra.mxu0 0
    %159 = vmatprep.subr.bf16.mxu0 0
    %160 = vmatpush1.bf16.msra.mxu0 0
    %161 = vmatprep.subr.bf16.mxu0 0
    %162 = vmatpush1.bf16.msra.mxu0 0
    %163 = vmatprep.mubr.bf16.mxu0 0
    %164 = vmatmul.mubr.bf16.gmra.mrb[0].mxu0 %v120
    %v165 = vpop.f32.mrb[0].mxu0
    %v166 = vadd.f32 0.0, %v165
    %v167 = vpop.f32.mrb[0].mxu0
    %v168 = vadd.f32 0.0, %v167
    %v169 = vpop.f32.mrb[0].mxu0
    %v170 = vadd.f32 0.0, %v169
    %v171 = vpop.f32.mrb[0].mxu0
    %v172 = vadd.f32 0.0, %v171
    %173 = vmatprep.mubr.bf16.mxu0 0
    %174 = vmatmul.mubr.bf16.gmra.mrb[0].mxu0 %v123
    %v175 = vpop.f32.mrb[0].mxu0
    %v176 = vadd.f32 0.0, %v175
    %v177 = vpop.f32.mrb[0].mxu0
    %v178 = vadd.f32 0.0, %v177
    %v179 = vpop.f32.mrb[0].mxu0
    %v180 = vadd.f32 0.0, %v179
    %v181 = vpop.f32.mrb[0].mxu0
    %v182 = vadd.f32 0.0, %v181
    %183 = vmatprep.mubr.bf16.mxu0 0
    %184 = vmatmul.mubr.bf16.gmra.mrb[0].mxu0 %v126
    %v185 = vpop.f32.mrb[0].mxu0
    %v186 = vadd.f32 0.0, %v185
    %v187 = vpop.f32.mrb[0].mxu0
    %v188 = vadd.f32 0.0, %v187
    %v189 = vpop.f32.mrb[0].mxu0
    %v190 = vadd.f32 0.0, %v189
    %v191 = vpop.f32.mrb[0].mxu0
    %v192 = vadd.f32 0.0, %v191
    %193 = vmatprep.mubr.bf16.mxu0 0
    %194 = vmatmul.mubr.bf16.gmra.mrb[0].mxu0 %v129
    %v195 = vpop.f32.mrb[0].mxu0
    %v196 = vadd.f32 0.0, %v195
    %v197 = vpop.f32.mrb[0].mxu0
    %v198 = vadd.f32 0.0, %v197
    %v199 = vpop.f32.mrb[0].mxu0
    %v200 = vadd.f32 0.0, %v199
    %v201 = vpop.f32.mrb[0].mxu0
    %v202 = vadd.f32 0.0, %v201
    %203 = vdwg.mxu0
    %205 = vset.pattern.permute.xlu0 0
    %206 = vperm.xlu0 %205, %v40
    %v207 = vpop.permute.xlu0 %206
    %210 = vset.pattern.permute.xlu0 0
    %211 = vperm.xlu0 %210, %v41
    %v212 = vpop.permute.xlu0 %211
    %215 = vset.pattern.permute.xlu0 0
    %216 = vperm.xlu0 %215, %v42
    %v217 = vpop.permute.xlu0 %216
    %220 = vset.pattern.permute.xlu0 0
    %221 = vperm.xlu0 %220, %v43
    %v222 = vpop.permute.xlu0 %221
    %225 = vset.pattern.permute.xlu0 0
    %226 = vperm.xlu0 %225, %v44
    %v227 = vpop.permute.xlu0 %226
    %230 = vset.pattern.permute.xlu0 0
    %231 = vperm.xlu0 %230, %v45
    %v232 = vpop.permute.xlu0 %231
    %235 = vset.pattern.permute.xlu0 0
    %236 = vperm.xlu0 %235, %v46
    %v237 = vpop.permute.xlu0 %236
    %240 = vset.pattern.permute.xlu0 0
    %241 = vperm.xlu0 %240, %v47
    %v242 = vpop.permute.xlu0 %241
    %v244 = vmul.f32 %v166, %v207
    %v245 = vmul.f32 %v168, %v207
    %v246 = vmul.f32 %v170, %v212
    %v247 = vmul.f32 %v172, %v212
    %v248 = vmul.f32 %v176, %v217
    %v249 = vmul.f32 %v178, %v217
    %v250 = vmul.f32 %v180, %v222
    %v251 = vmul.f32 %v182, %v222
    %v252 = vmul.f32 %v186, %v227
    %v253 = vmul.f32 %v188, %v227
    %v254 = vmul.f32 %v190, %v232
    %v255 = vmul.f32 %v192, %v232
    %v256 = vmul.f32 %v196, %v237
    %v257 = vmul.f32 %v198, %v237
    %v258 = vmul.f32 %v200, %v242
    %v259 = vmul.f32 %v202, %v242
    %261 = vset.pattern.permute.xlu0 0
    %262 = vperm.xlu0 %261, %v48
    %v263 = vpop.permute.xlu0 %262
    %266 = vset.pattern.permute.xlu0 0
    %267 = vperm.xlu0 %266, %v49
    %v268 = vpop.permute.xlu0 %267
    %271 = vset.pattern.permute.xlu0 0
    %272 = vperm.xlu0 %271, %v50
    %v273 = vpop.permute.xlu0 %272
    %276 = vset.pattern.permute.xlu0 0
    %277 = vperm.xlu0 %276, %v51
    %v278 = vpop.permute.xlu0 %277
    %281 = vset.pattern.permute.xlu0 0
    %282 = vperm.xlu0 %281, %v52
    %v283 = vpop.permute.xlu0 %282
    %286 = vset.pattern.permute.xlu0 0
    %287 = vperm.xlu0 %286, %v53
    %v288 = vpop.permute.xlu0 %287
    %291 = vset.pattern.permute.xlu0 0
    %292 = vperm.xlu0 %291, %v54
    %v293 = vpop.permute.xlu0 %292
    %296 = vset.pattern.permute.xlu0 0
    %297 = vperm.xlu0 %296, %v55
    %v298 = vpop.permute.xlu0 %297
    %v300 = vadd.f32 %v244, %v263
    %v301 = vadd.f32 %v245, %v263
    %v302 = vadd.f32 %v246, %v268
    %v303 = vadd.f32 %v247, %v268
    %v304 = vadd.f32 %v248, %v273
    %v305 = vadd.f32 %v249, %v273
    %v306 = vadd.f32 %v250, %v278
    %v307 = vadd.f32 %v251, %v278
    %v308 = vadd.f32 %v252, %v283
    %v309 = vadd.f32 %v253, %v283
    %v310 = vadd.f32 %v254, %v288
    %v311 = vadd.f32 %v255, %v288
    %v312 = vadd.f32 %v256, %v293
    %v313 = vadd.f32 %v257, %v293
    %v314 = vadd.f32 %v258, %v298
    %v315 = vadd.f32 %v259, %v298
    %v316 = vmax.f32 %v300, 0.0
    %v317 = vmax.f32 %v301, 0.0
    %v318 = vmax.f32 %v302, 0.0
    %v319 = vmax.f32 %v303, 0.0
    %v320 = vmax.f32 %v304, 0.0
    %v321 = vmax.f32 %v305, 0.0
    %v322 = vmax.f32 %v306, 0.0
    %v323 = vmax.f32 %v307, 0.0
    %v324 = vmax.f32 %v308, 0.0
    %v325 = vmax.f32 %v309, 0.0
    %v326 = vmax.f32 %v310, 0.0
    %v327 = vmax.f32 %v311, 0.0
    %v328 = vmax.f32 %v312, 0.0
    %v329 = vmax.f32 %v313, 0.0
    %v330 = vmax.f32 %v314, 0.0
    %v331 = vmax.f32 %v315, 0.0
    %333 = vset.pattern.permute.xlu0 0
    %334 = vperm.xlu0 %333, %v56
    %v335 = vpop.permute.xlu0 %334
    %338 = vset.pattern.permute.xlu0 0
    %339 = vperm.xlu0 %338, %v57
    %v340 = vpop.permute.xlu0 %339
    %343 = vset.pattern.permute.xlu0 0
    %344 = vperm.xlu0 %343, %v58
    %v345 = vpop.permute.xlu0 %344
    %348 = vset.pattern.permute.xlu0 0
    %349 = vperm.xlu0 %348, %v59
    %v350 = vpop.permute.xlu0 %349
    %353 = vset.pattern.permute.xlu0 0
    %354 = vperm.xlu0 %353, %v60
    %v355 = vpop.permute.xlu0 %354
    %358 = vset.pattern.permute.xlu0 0
    %359 = vperm.xlu0 %358, %v61
    %v360 = vpop.permute.xlu0 %359
    %363 = vset.pattern.permute.xlu0 0
    %364 = vperm.xlu0 %363, %v62
    %v365 = vpop.permute.xlu0 %364
    %368 = vset.pattern.permute.xlu0 0
    %369 = vperm.xlu0 %368, %v63
    %v370 = vpop.permute.xlu0 %369
    %v372 = vmul.f32 %v316, %v335
    %v373 = vmul.f32 %v317, %v335
    %v374 = vmul.f32 %v318, %v340
    %v375 = vmul.f32 %v319, %v340
    %v376 = vmul.f32 %v320, %v345
    %v377 = vmul.f32 %v321, %v345
    %v378 = vmul.f32 %v322, %v350
    %v379 = vmul.f32 %v323, %v350
    %v380 = vmul.f32 %v324, %v355
    %v381 = vmul.f32 %v325, %v355
    %v382 = vmul.f32 %v326, %v360
    %v383 = vmul.f32 %v327, %v360
    %v384 = vmul.f32 %v328, %v365
    %v385 = vmul.f32 %v329, %v365
    %v386 = vmul.f32 %v330, %v370
    %v387 = vmul.f32 %v331, %v370
    %v388 = vadd.f32 %v372, %v374
    %v389 = vadd.f32 %v388, %v376
    %v390 = vadd.f32 %v389, %v378
    %v391 = vrot.slane %v390, 4
    %v392 = vadd.f32 %v390, %v391
    %v393 = vrot.slane %v392, 2
    %v394 = vadd.f32 %v392, %v393
    %v395 = vrot.slane %v394, 1
    %v396 = vadd.f32 %v394, %v395
    %v397 = vadd.f32 %v373, %v375
    %v398 = vadd.f32 %v397, %v377
    %v399 = vadd.f32 %v398, %v379
    %v400 = vrot.slane %v399, 4
    %v401 = vadd.f32 %v399, %v400
    %v402 = vrot.slane %v401, 2
    %v403 = vadd.f32 %v401, %v402
    %v404 = vrot.slane %v403, 1
    %v405 = vadd.f32 %v403, %v404
    %v406 = vadd.f32 %v380, %v382
    %v407 = vadd.f32 %v406, %v384
    %v408 = vadd.f32 %v407, %v386
    %v409 = vrot.slane %v408, 4
    %v410 = vadd.f32 %v408, %v409
    %v411 = vrot.slane %v410, 2
    %v412 = vadd.f32 %v410, %v411
    %v413 = vrot.slane %v412, 1
    %v414 = vadd.f32 %v412, %v413
    %v415 = vadd.f32 %v381, %v383
    %v416 = vadd.f32 %v415, %v385
    %v417 = vadd.f32 %v416, %v387
    %v418 = vrot.slane %v417, 4
    %v419 = vadd.f32 %v417, %v418
    %v420 = vrot.slane %v419, 2
    %v421 = vadd.f32 %v419, %v420
    %v422 = vrot.slane %v421, 1
    %v423 = vadd.f32 %v421, %v422
    %vm424 = vcmask 1040384
    %v425 = vsel %vm424, %v396, %v414
    %v426 = vsel %vm424, %v405, %v423
    %428 = vset.pattern.permute.xlu0 0
    %429 = vperm.xlu0 %428, %v64
    %v430 = vpop.permute.xlu0 %429
    %v432 = vadd.f32 %v425, %v430
    %v433 = vadd.f32 %v426, %v430
    %v434 = vxor.u32 %v432, 2147483648
    %v435 = vxor.u32 %v433, 2147483648
    %v436 = vmul.f32 %v434, 1.442695
    %v437 = vpow.pop %v436
    %v438 = vmul.f32 %v435, 1.442695
    %v439 = vpow.pop %v438
    %v440 = vadd.f32 %v437, 1.0
    %v441 = vadd.f32 %v439, 1.0
    %v442 = vrcp.pop %v440
    %v443 = vmul.f32 1.0, %v442
    %v444 = vrcp.pop %v441
    %v445 = vmul.f32 1.0, %v444
    %v446 = vpack.c.bf16 %v443, %v443
    %v447 = vpack.c.bf16 %v445, %v445
    %v450 = vcombine.low %v446, %v447
    %v452 = vunpack.c.l.s4 1966171168
    %v453 = vunpack.c.0.s8 %v452
    %v454 = vlaneseq
    %v455 = vshrl.u32 %v454, 7
    %v456 = vsub.s32 %v453, %v455
    %v457 = vrot.slane %v450, %v456
    %v459 = vunpack.c.l.s4 1966171168
    %v460 = vunpack.c.0.s8 %v459
    %v461 = vlaneseq
    %v462 = vshrl.u32 %v461, 7
    %v463 = vsub.s32 %v460, %v462
    %v464 = vrot.slane %v457, %v463
    %s466 = smul.u32 %s66, 2
    %s467 = scalar_lea.vmem %s9, %s466
    %468 = vst [vmem:[%s467] sm:$0x3] %v464
    %469 = vmatprep.subr.bf16.mxu0 %v447
    %470 = vmatpush1.bf16.xpose.msra.mxu0 %v446
    %471 = vmatprep.subr.bf16.mxu0 0
    %472 = vmatpush1.bf16.xpose.msra.mxu0 0
    %473 = vmatprep.subr.bf16.mxu0 0
    %474 = vmatpush1.bf16.xpose.msra.mxu0 0
    %475 = vmatprep.subr.bf16.mxu0 0
    %476 = vmatpush1.bf16.xpose.msra.mxu0 0
    %477 = vmatprep.subr.bf16.mxu0 0
    %478 = vmatpush1.bf16.xpose.msra.mxu0 0
    %479 = vmatprep.subr.bf16.mxu0 0
    %480 = vmatpush1.bf16.xpose.msra.mxu0 0
    %481 = vmatprep.subr.bf16.mxu0 0
    %482 = vmatpush1.bf16.xpose.msra.mxu0 0
    %483 = vmatprep.subr.bf16.mxu0 0
    %484 = vmatpush1.bf16.xpose.msra.mxu0 0
    %485 = vmatprep.subr.bf16.mxu0 0
    %486 = vmatpush1.bf16.xpose.msra.mxu0 0
    %487 = vmatprep.subr.bf16.mxu0 0
    %488 = vmatpush1.bf16.xpose.msra.mxu0 0
    %489 = vmatprep.subr.bf16.mxu0 0
    %490 = vmatpush1.bf16.xpose.msra.mxu0 0
    %491 = vmatprep.subr.bf16.mxu0 0
    %492 = vmatpush1.bf16.xpose.msra.mxu0 0
    %493 = vmatprep.subr.bf16.mxu0 0
    %494 = vmatpush1.bf16.xpose.msra.mxu0 0
    %495 = vmatprep.subr.bf16.mxu0 0
    %496 = vmatpush1.bf16.xpose.msra.mxu0 0
    %497 = vmatprep.subr.bf16.mxu0 0
    %498 = vmatpush1.bf16.xpose.msra.mxu0 0
    %499 = vmatprep.subr.bf16.mxu0 0
    %500 = vmatpush1.bf16.xpose.msra.mxu0 0
    %501 = vmatprep.mubr.bf16.mxu0 %v111
    %502 = vmatmul.mubr.bf16.gmra.mrb[0].mxu0 %v110
    %v503 = vpop.f32.mrb[0].mxu0
    %v504 = vadd.f32 0.0, %v503
    %v505 = vpop.f32.mrb[0].mxu0
    %v506 = vpop.f32.mrb[0].mxu0
    %v507 = vadd.f32 0.0, %v506
    %v508 = vpop.f32.mrb[0].mxu0
    %509 = vmatprep.mubr.bf16.mxu0 %v113
    %510 = vmatmul.mubr.bf16.gmra.mrb[0].mxu0 %v112
    %v511 = vpop.f32.mrb[0].mxu0
    %v512 = vadd.f32 0.0, %v511
    %v513 = vpop.f32.mrb[0].mxu0
    %v514 = vpop.f32.mrb[0].mxu0
    %v515 = vadd.f32 0.0, %v514
    %v516 = vpop.f32.mrb[0].mxu0
    %517 = vdwg.mxu0
    %518 = vxpose.xlu0.b32.start [1/16] %v504, 128
    %519 = vxpose.xlu0.b32.cont [2/16] %v507, 128
    %520 = vxpose.xlu0.b32.cont [3/16] %v512, 128
    %521 = vxpose.xlu0.b32.cont [4/16] %v515, 128
    %522 = vxpose.xlu0.b32.cont [5/16] 0.0, 128
    %523 = vxpose.xlu0.b32.cont [6/16] 0.0, 128
    %524 = vxpose.xlu0.b32.cont [7/16] 0.0, 128
    %525 = vxpose.xlu0.b32.cont [8/16] 0.0, 128
    %526 = vxpose.xlu0.b32.cont [9/16] 0.0, 128
    %527 = vxpose.xlu0.b32.cont [10/16] 0.0, 128
    %528 = vxpose.xlu0.b32.cont [11/16] 0.0, 128
    %529 = vxpose.xlu0.b32.cont [12/16] 0.0, 128
    %530 = vxpose.xlu0.b32.cont [13/16] 0.0, 128
    %531 = vxpose.xlu0.b32.cont [14/16] 0.0, 128
    %532 = vxpose.xlu0.b32.cont [15/16] 0.0, 128
    %533 = vxpose.xlu0.b32.end [16/16] 0.0, 128
    %v534 = vpop.trf.xlu0
    %v535 = vpop.trf.xlu0
    %v536 = vpop.trf.xlu0
    %v537 = vpop.trf.xlu0
    %v538 = vpop.trf.xlu0
    %v539 = vpop.trf.xlu0
    %v540 = vpop.trf.xlu0
    %v541 = vpop.trf.xlu0
    %v542 = vpop.trf.xlu0
    %v543 = vpop.trf.xlu0
    %v544 = vpop.trf.xlu0
    %v545 = vpop.trf.xlu0
    %v546 = vpop.trf.xlu0
    %v547 = vpop.trf.xlu0
    %v548 = vpop.trf.xlu0
    %v549 = vpop.trf.xlu0
    %v550 = vmul.f32 %v534, 0.00390625
    %s551 = scalar_lea.vmem [#allocation2], %s466
    %vm552 = vcmask 254976
    %553 = vst.msk [vmem:[%s551] sm:$0x3] %vm552, %v550
  $region38: #{osme_mamc_forward.1} parent=0 // loop_footer
    %s70 = sadd.s32 1, %s66
  $region39: #{osme_mamc_forward.1} parent=0 // loop_footer_branch
    %65 = sbr.rel target = $region35
  $region40: #{osme_mamc_forward.1} parent=0 // loop_exit
    _
  %v554 = vld [vmem:[#allocation2] sm:$0x1]
  %v555 = vld [vmem:[#allocation2 + $0x2] sm:$0x1]
  %v556 = vpack.c.bf16 %v554, %v554
  %v557 = vpack.c.bf16 %v555, %v555
  %v558 = vld [vmem:[%s6] sm:$0xff]
  %v559 = vld [vmem:[%s6 + $0x8] sm:$0xff]
  %v560 = vld [vmem:[%s6 + $0x10] sm:$0xff]
  %v561 = vld [vmem:[%s6 + $0x18] sm:$0xff]
  %v562 = vld [vmem:[%s6 + $0x20] sm:$0xff]
  %v563 = vld [vmem:[%s6 + $0x28] sm:$0xff]
  %v564 = vld [vmem:[%s6 + $0x30] sm:$0xff]
  %v565 = vld [vmem:[%s6 + $0x38] sm:$0xff]
  %v566 = vld [vmem:[%s7] sm:$0xf]
  %v568 = vlaneseq
  %v569 = vshrl.u32 %v568, 7
  %v570 = vsub.s32 0, %v569
  %v571 = vrot.slane %v566, %v570
  %v572 = vlaneseq
  %v573 = vshrl.u32 %v572, 7
  %v574 = vsub.s32 1, %v573
  %v575 = vrot.slane %v566, %v574
  %v576 = vlaneseq
  %v577 = vshrl.u32 %v576, 7
  %v578 = vsub.s32 2, %v577
  %v579 = vrot.slane %v566, %v578
  %v580 = vlaneseq
  %v581 = vshrl.u32 %v580, 7
  %v582 = vsub.s32 3, %v581
  %v583 = vrot.slane %v566, %v582
  %v590 = vunpack.c.l.b16 %v556
  %v591 = vunpack.c.l.b16 %v557
  %v592 = vrot.slane %v591, 7
  %vm593 = vcmask 1041409
  %v594 = vsel %vm593, %v592, %v590
  %v595 = vpack.c.b16 %v594, %v594
  %v604 = vunpack.c.l.b16 %v558
  %v605 = vunpack.c.h.b16 %v558
  %v606 = vunpack.c.l.b16 %v559
  %v607 = vunpack.c.h.b16 %v559
  %v608 = vunpack.c.l.b16 %v560
  %v609 = vunpack.c.h.b16 %v560
  %v610 = vunpack.c.l.b16 %v561
  %v611 = vunpack.c.h.b16 %v561
  %v612 = vunpack.c.l.b16 %v562
  %v613 = vunpack.c.h.b16 %v562
  %v614 = vunpack.c.l.b16 %v563
  %v615 = vunpack.c.h.b16 %v563
  %v616 = vunpack.c.l.b16 %v564
  %v617 = vunpack.c.h.b16 %v564
  %v618 = vunpack.c.l.b16 %v565
  %v619 = vunpack.c.h.b16 %v565
  %v620 = vpack.c.b16 %v608, %v604
  %v621 = vpack.c.b16 %v609, %v605
  %v622 = vpack.c.b16 %v610, %v606
  %v623 = vpack.c.b16 %v611, %v607
  %v624 = vpack.c.b16 %v616, %v612
  %v625 = vpack.c.b16 %v617, %v613
  %v626 = vpack.c.b16 %v618, %v614
  %v627 = vpack.c.b16 %v619, %v615
  %vm636 = vcmask 261120
  %v638 = vsel %vm636, %v595, 0
  %640 = vmatprep.subr.bf16.mxu0 %v621
  %641 = vmatpush1.bf16.msra.mxu0 %v620
  %642 = vmatprep.subr.bf16.mxu0 %v625
  %643 = vmatpush1.bf16.msra.mxu0 %v624
  %644 = vmatprep.subr.bf16.mxu0 0
  %645 = vmatpush1.bf16.msra.mxu0 0
  %646 = vmatprep.subr.bf16.mxu0 0
  %647 = vmatpush1.bf16.msra.mxu0 0
  %648 = vmatprep.subr.bf16.mxu0 0
  %649 = vmatpush1.bf16.msra.mxu0 0
  %650 = vmatprep.subr.bf16.mxu0 0
  %651 = vmatpush1.bf16.msra.mxu0 0
  %652 = vmatprep.subr.bf16.mxu0 0
  %653 = vmatpush1.bf16.msra.mxu0 0
  %654 = vmatprep.subr.bf16.mxu0 0
  %655 = vmatpush1.bf16.msra.mxu0 0
  %656 = vmatprep.subr.bf16.mxu0 0
  %657 = vmatpush1.bf16.msra.mxu0 0
  %658 = vmatprep.subr.bf16.mxu0 0
  %659 = vmatpush1.bf16.msra.mxu0 0
  %660 = vmatprep.subr.bf16.mxu0 0
  %661 = vmatpush1.bf16.msra.mxu0 0
  %662 = vmatprep.subr.bf16.mxu0 0
  %663 = vmatpush1.bf16.msra.mxu0 0
  %664 = vmatprep.subr.bf16.mxu0 0
  %665 = vmatpush1.bf16.msra.mxu0 0
  %666 = vmatprep.subr.bf16.mxu0 0
  %667 = vmatpush1.bf16.msra.mxu0 0
  %668 = vmatprep.subr.bf16.mxu0 0
  %669 = vmatpush1.bf16.msra.mxu0 0
  %670 = vmatprep.subr.bf16.mxu0 0
  %671 = vmatpush1.bf16.msra.mxu0 0
  %672 = vmatprep.mubr.bf16.mxu0 0
  %673 = vmatmul.mubr.bf16.gmra.mrb[0].mxu0 %v638
  %v674 = vpop.f32.mrb[0].mxu0
  %v675 = vadd.f32 %v571, %v674
  %v676 = vpop.f32.mrb[0].mxu0
  %v677 = vadd.f32 %v575, %v676
  %v678 = vpop.f32.mrb[0].mxu0
  %v679 = vpop.f32.mrb[0].mxu0
  %680 = vdwg.mxu0
  %681 = vmatprep.subr.bf16.mxu0 %v623
  %682 = vmatpush1.bf16.msra.mxu0 %v622
  %683 = vmatprep.subr.bf16.mxu0 %v627
  %684 = vmatpush1.bf16.msra.mxu0 %v626
  %685 = vmatprep.subr.bf16.mxu0 0
  %686 = vmatpush1.bf16.msra.mxu0 0
  %687 = vmatprep.subr.bf16.mxu0 0
  %688 = vmatpush1.bf16.msra.mxu0 0
  %689 = vmatprep.subr.bf16.mxu0 0
  %690 = vmatpush1.bf16.msra.mxu0 0
  %691 = vmatprep.subr.bf16.mxu0 0
  %692 = vmatpush1.bf16.msra.mxu0 0
  %693 = vmatprep.subr.bf16.mxu0 0
  %694 = vmatpush1.bf16.msra.mxu0 0
  %695 = vmatprep.subr.bf16.mxu0 0
  %696 = vmatpush1.bf16.msra.mxu0 0
  %697 = vmatprep.subr.bf16.mxu0 0
  %698 = vmatpush1.bf16.msra.mxu0 0
  %699 = vmatprep.subr.bf16.mxu0 0
  %700 = vmatpush1.bf16.msra.mxu0 0
  %701 = vmatprep.subr.bf16.mxu0 0
  %702 = vmatpush1.bf16.msra.mxu0 0
  %703 = vmatprep.subr.bf16.mxu0 0
  %704 = vmatpush1.bf16.msra.mxu0 0
  %705 = vmatprep.subr.bf16.mxu0 0
  %706 = vmatpush1.bf16.msra.mxu0 0
  %707 = vmatprep.subr.bf16.mxu0 0
  %708 = vmatpush1.bf16.msra.mxu0 0
  %709 = vmatprep.subr.bf16.mxu0 0
  %710 = vmatpush1.bf16.msra.mxu0 0
  %711 = vmatprep.subr.bf16.mxu0 0
  %712 = vmatpush1.bf16.msra.mxu0 0
  %713 = vmatprep.mubr.bf16.mxu0 0
  %714 = vmatmul.mubr.bf16.gmra.mrb[0].mxu0 %v638
  %v715 = vpop.f32.mrb[0].mxu0
  %v716 = vadd.f32 %v579, %v715
  %v717 = vpop.f32.mrb[0].mxu0
  %v718 = vadd.f32 %v583, %v717
  %v719 = vpop.f32.mrb[0].mxu0
  %v720 = vpop.f32.mrb[0].mxu0
  %721 = vdwg.mxu0
  %v726 = vcombine.low %v675, %v677
  %v727 = vcombine.low %v716, %v718
  %v729 = vunpack.c.l.s4 1983009808
  %v730 = vunpack.c.0.s8 %v729
  %v731 = vlaneseq
  %v732 = vshrl.u32 %v731, 7
  %v733 = vsub.s32 %v730, %v732
  %v734 = vrot.slane %v726, %v733
  %v736 = vunpack.c.l.s4 1983009808
  %v737 = vunpack.c.0.s8 %v736
  %v738 = vlaneseq
  %v739 = vshrl.u32 %v738, 7
  %v740 = vsub.s32 %v737, %v739
  %v741 = vrot.slane %v727, %v740
  %v742 = vcombine.low %v734, %v741
  %744 = vst [vmem:[%s8] sm:$0xff] %v742
  %v745 = vld [vmem:[#allocation2 + $0x1] sm:$0x1]
  %v746 = vld [vmem:[#allocation2 + $0x3] sm:$0x1]
  %v747 = vpack.c.bf16 %v745, %v745
  %v748 = vpack.c.bf16 %v746, %v746
  %s749 = scalar_lea.vmem %s6, 64
  %v750 = vld [vmem:[%s749] sm:$0xff]
  %v751 = vld [vmem:[%s749 + $0x8] sm:$0xff]
  %v752 = vld [vmem:[%s749 + $0x10] sm:$0xff]
  %v753 = vld [vmem:[%s749 + $0x18] sm:$0xff]
  %v754 = vld [vmem:[%s749 + $0x20] sm:$0xff]
  %v755 = vld [vmem:[%s749 + $0x28] sm:$0xff]
  %v756 = vld [vmem:[%s749 + $0x30] sm:$0xff]
  %v757 = vld [vmem:[%s749 + $0x38] sm:$0xff]
  %s758 = scalar_lea.vmem %s7, 4
  %v759 = vld [vmem:[%s758] sm:$0xf]
  %v761 = vlaneseq
  %v762 = vshrl.u32 %v761, 7
  %v763 = vsub.s32 0, %v762
  %v764 = vrot.slane %v759, %v763
  %v765 = vlaneseq
  %v766 = vshrl.u32 %v765, 7
  %v767 = vsub.s32 1, %v766
  %v768 = vrot.slane %v759, %v767
  %v769 = vlaneseq
  %v770 = vshrl.u32 %v769, 7
  %v771 = vsub.s32 2, %v770
  %v772 = vrot.slane %v759, %v771
  %v773 = vlaneseq
  %v774 = vshrl.u32 %v773, 7
  %v775 = vsub.s32 3, %v774
  %v776 = vrot.slane %v759, %v775
  %v783 = vunpack.c.l.b16 %v747
  %v784 = vunpack.c.l.b16 %v748
  %v785 = vrot.slane %v784, 7
  %v786 = vsel %vm593, %v785, %v783
  %v787 = vpack.c.b16 %v786, %v786
  %v796 = vunpack.c.l.b16 %v750
  %v797 = vunpack.c.h.b16 %v750
  %v798 = vunpack.c.l.b16 %v751
  %v799 = vunpack.c.h.b16 %v751
  %v800 = vunpack.c.l.b16 %v752
  %v801 = vunpack.c.h.b16 %v752
  %v802 = vunpack.c.l.b16 %v753
  %v803 = vunpack.c.h.b16 %v753
  %v804 = vunpack.c.l.b16 %v754
  %v805 = vunpack.c.h.b16 %v754
  %v806 = vunpack.c.l.b16 %v755
  %v807 = vunpack.c.h.b16 %v755
  %v808 = vunpack.c.l.b16 %v756
  %v809 = vunpack.c.h.b16 %v756
  %v810 = vunpack.c.l.b16 %v757
  %v811 = vunpack.c.h.b16 %v757
  %v812 = vpack.c.b16 %v800, %v796
  %v813 = vpack.c.b16 %v801, %v797
  %v814 = vpack.c.b16 %v802, %v798
  %v815 = vpack.c.b16 %v803, %v799
  %v816 = vpack.c.b16 %v808, %v804
  %v817 = vpack.c.b16 %v809, %v805
  %v818 = vpack.c.b16 %v810, %v806
  %v819 = vpack.c.b16 %v811, %v807
  %v829 = vsel %vm636, %v787, 0
  %831 = vmatprep.subr.bf16.mxu0 %v813
  %832 = vmatpush1.bf16.msra.mxu0 %v812
  %833 = vmatprep.subr.bf16.mxu0 %v817
  %834 = vmatpush1.bf16.msra.mxu0 %v816
  %835 = vmatprep.subr.bf16.mxu0 0
  %836 = vmatpush1.bf16.msra.mxu0 0
  %837 = vmatprep.subr.bf16.mxu0 0
  %838 = vmatpush1.bf16.msra.mxu0 0
  %839 = vmatprep.subr.bf16.mxu0 0
  %840 = vmatpush1.bf16.msra.mxu0 0
  %841 = vmatprep.subr.bf16.mxu0 0
  %842 = vmatpush1.bf16.msra.mxu0 0
  %843 = vmatprep.subr.bf16.mxu0 0
  %844 = vmatpush1.bf16.msra.mxu0 0
  %845 = vmatprep.subr.bf16.mxu0 0
  %846 = vmatpush1.bf16.msra.mxu0 0
  %847 = vmatprep.subr.bf16.mxu0 0
  %848 = vmatpush1.bf16.msra.mxu0 0
  %849 = vmatprep.subr.bf16.mxu0 0
  %850 = vmatpush1.bf16.msra.mxu0 0
  %851 = vmatprep.subr.bf16.mxu0 0
  %852 = vmatpush1.bf16.msra.mxu0 0
  %853 = vmatprep.subr.bf16.mxu0 0
  %854 = vmatpush1.bf16.msra.mxu0 0
  %855 = vmatprep.subr.bf16.mxu0 0
  %856 = vmatpush1.bf16.msra.mxu0 0
  %857 = vmatprep.subr.bf16.mxu0 0
  %858 = vmatpush1.bf16.msra.mxu0 0
  %859 = vmatprep.subr.bf16.mxu0 0
  %860 = vmatpush1.bf16.msra.mxu0 0
  %861 = vmatprep.subr.bf16.mxu0 0
  %862 = vmatpush1.bf16.msra.mxu0 0
  %863 = vmatprep.mubr.bf16.mxu0 0
  %864 = vmatmul.mubr.bf16.gmra.mrb[0].mxu0 %v829
  %v865 = vpop.f32.mrb[0].mxu0
  %v866 = vadd.f32 %v764, %v865
  %v867 = vpop.f32.mrb[0].mxu0
  %v868 = vadd.f32 %v768, %v867
  %v869 = vpop.f32.mrb[0].mxu0
  %v870 = vpop.f32.mrb[0].mxu0
  %871 = vdwg.mxu0
  %872 = vmatprep.subr.bf16.mxu0 %v815
  %873 = vmatpush1.bf16.msra.mxu0 %v814
  %874 = vmatprep.subr.bf16.mxu0 %v819
  %875 = vmatpush1.bf16.msra.mxu0 %v818
  %876 = vmatprep.subr.bf16.mxu0 0
  %877 = vmatpush1.bf16.msra.mxu0 0
  %878 = vmatprep.subr.bf16.mxu0 0
  %879 = vmatpush1.bf16.msra.mxu0 0
  %880 = vmatprep.subr.bf16.mxu0 0
  %881 = vmatpush1.bf16.msra.mxu0 0
  %882 = vmatprep.subr.bf16.mxu0 0
  %883 = vmatpush1.bf16.msra.mxu0 0
  %884 = vmatprep.subr.bf16.mxu0 0
  %885 = vmatpush1.bf16.msra.mxu0 0
  %886 = vmatprep.subr.bf16.mxu0 0
  %887 = vmatpush1.bf16.msra.mxu0 0
  %888 = vmatprep.subr.bf16.mxu0 0
  %889 = vmatpush1.bf16.msra.mxu0 0
  %890 = vmatprep.subr.bf16.mxu0 0
  %891 = vmatpush1.bf16.msra.mxu0 0
  %892 = vmatprep.subr.bf16.mxu0 0
  %893 = vmatpush1.bf16.msra.mxu0 0
  %894 = vmatprep.subr.bf16.mxu0 0
  %895 = vmatpush1.bf16.msra.mxu0 0
  %896 = vmatprep.subr.bf16.mxu0 0
  %897 = vmatpush1.bf16.msra.mxu0 0
  %898 = vmatprep.subr.bf16.mxu0 0
  %899 = vmatpush1.bf16.msra.mxu0 0
  %900 = vmatprep.subr.bf16.mxu0 0
  %901 = vmatpush1.bf16.msra.mxu0 0
  %902 = vmatprep.subr.bf16.mxu0 0
  %903 = vmatpush1.bf16.msra.mxu0 0
  %904 = vmatprep.mubr.bf16.mxu0 0
  %905 = vmatmul.mubr.bf16.gmra.mrb[0].mxu0 %v829
  %v906 = vpop.f32.mrb[0].mxu0
  %v907 = vadd.f32 %v772, %v906
  %v908 = vpop.f32.mrb[0].mxu0
  %v909 = vadd.f32 %v776, %v908
  %v910 = vpop.f32.mrb[0].mxu0
  %v911 = vpop.f32.mrb[0].mxu0
  %912 = vdwg.mxu0
  %v917 = vcombine.low %v866, %v868
  %v918 = vcombine.low %v907, %v909
  %v920 = vunpack.c.l.s4 1983009808
  %v921 = vunpack.c.0.s8 %v920
  %v922 = vlaneseq
  %v923 = vshrl.u32 %v922, 7
  %v924 = vsub.s32 %v921, %v923
  %v925 = vrot.slane %v917, %v924
  %v927 = vunpack.c.l.s4 1983009808
  %v928 = vunpack.c.0.s8 %v927
  %v929 = vlaneseq
  %v930 = vshrl.u32 %v929, 7
  %v931 = vsub.s32 %v928, %v930
  %v932 = vrot.slane %v918, %v931
  %v933 = vcombine.low %v925, %v932
  %935 = vst [vmem:[%s8 + $0x8] sm:$0xff] %v933
  // Predicated region
  $region41: #{osme_mamc_forward.1} parent=0 // pred_check
    _
  $region42: #{osme_mamc_forward.1} parent=0 // pred_check_branch
    %937 = sbr.rel (0) target = $region44
  $region43: #{osme_mamc_forward.1} parent=0 // pred_region
    _
  $region44: #{osme_mamc_forward.1} parent=0 // pred_fallthru
    _
  // Predicated region
  $region45: #{osme_mamc_forward.1} parent=0 // pred_check
    _
  $region46: #{osme_mamc_forward.1} parent=0 // pred_check_branch
    %939 = sbr.rel (0) target = $region48
  $region47: #{osme_mamc_forward.1} parent=0 // pred_region
    _
  $region48: #{osme_mamc_forward.1} parent=0 // pred_fallthru
    _
  // Predicated region
  $region49: #{osme_mamc_forward.1} parent=0 // pred_check
    _
  $region50: #{osme_mamc_forward.1} parent=0 // pred_check_branch
    %941 = sbr.rel (0) target = $region52
  $region51: #{osme_mamc_forward.1} parent=0 // pred_region
    _
  $region52: #{osme_mamc_forward.1} parent=0 // pred_fallthru
    _
  // Predicated region
  $region53: #{osme_mamc_forward.1} parent=0 // pred_check
    _
  $region54: #{osme_mamc_forward.1} parent=0 // pred_check_branch
    %943 = sbr.rel (0) target = $region56
  $region55: #{osme_mamc_forward.1} parent=0 // pred_region
    _
  $region56: #{osme_mamc_forward.1} parent=0 // pred_fallthru
    _

</llo_original>
